<compile_context>
chip_gen: v7x
topology: tpu7x:2x2x1
jax: 0.10.0
libtpu: 0.0.40
codegen_flags: <defaults>
</compile_context>

<pallas_src>
import functools
import math

import jax
import jax.numpy as jnp
from jax.experimental import pallas as pl
from jax.experimental.pallas import tpu as pltpu


# ---------------------------------------------------------------------------
# Pallas kernels
# ---------------------------------------------------------------------------

def _pdist_kernel(v_ref, d_ref):
    """Per-row-ordering-equivalent pairwise distances for one batch element.

    d[i, j] = -2 * <v_i, v_j> + |v_j|^2   (the row-constant |v_i|^2 term is dropped:
    it does not change per-row top-k ordering, and the diagonal stays the row minimum).
    """
    v = v_ref[...]
    dn = (((1,), (1,)), ((), ()))
    inner = jax.lax.dot_general(v, v, dn, preferred_element_type=jnp.float32)      # v @ v.T
    q = jnp.sum(v * v, axis=1, keepdims=True)                                      # (N, 1)
    ones = jnp.ones_like(q)
    q_row = jax.lax.dot_general(ones, q, dn, preferred_element_type=jnp.float32)   # [i,j]=|v_j|^2
    d_ref[...] = q_row - 2.0 * inner
    # TODO(synk): for large N, tile over query rows (block (tq,3) -> (tq,N)) instead of a
    # full (N,N) block so the output block fits v7x's smaller VMEM.


def _gcn_fusion_kernel(nbr_ref, vert_ref, feat_ref,
                       wc_l_ref, ws_l_ref, bc_l_ref, bs_l_ref, dir_l_ref,
                       wc_g0_ref, ws_g0_ref, bc_g0_ref, bs_g0_ref, dir_g0_ref,
                       wc_g1_ref, ws_g1_ref, bc_g1_ref, bs_g1_ref, dir_g1_ref,
                       gam_l_ref, bet_l_ref, gam_g0_ref, bet_g0_ref,
                       gam_g1_ref, bet_g1_ref,
                       out_ref, *, k_l):
    """Fully fused GCN_Fusion forward on the flattened (B*N) row axis.

    nbr:   (M, Kg) int32, neighbour row indices already offset into the flat row space
    vert:  (M, 3), feat: (M, Cin)
    per conv: wc (Cin, C) bf16, ws (Cin, S*C) bf16, bc (1, C), bs (1, S*C), dir (3, S*C)
    per BN:   gamma/beta (1, C)
    out:   (M, 2C) = [ BN+ReLU(conv_l) | BN+ReLU(conv_g1(BN+ReLU(conv_g0))) ]
    """
    M, k_g = nbr_ref.shape
    C = bc_l_ref.shape[1]
    SC = bs_l_ref.shape[1]
    S = SC // C

    nbr = nbr_ref[...]
    verts_bf = vert_ref[...].astype(jnp.bfloat16)
    verts = verts_bf.astype(jnp.float32)            # bf16-rounded, consistent with gathered rows
    col = jax.lax.broadcasted_iota(jnp.int32, (M, M), 1)

    def lin(x_bf, wc_ref, ws_ref, bc_ref, bs_ref):
        fc = jnp.dot(x_bf, wc_ref[...], preferred_element_type=jnp.float32) + bc_ref[...]
        fs = jnp.dot(x_bf, ws_ref[...], preferred_element_type=jnp.float32) + bs_ref[...]
        return fc, fs

    def theta(dhat, dir_ref):
        # (M,3) x (3,SC) via 3 broadcasted VPU FMAs (contraction dim of 3 wastes an MXU pass).
        d = dir_ref[...]
        t = (dhat[:, 0:1] * d[0:1, :] + dhat[:, 1:2] * d[1:2, :] + dhat[:, 2:3] * d[2:3, :])
        return jnp.maximum(t, 0.0)                  # ReLU on theta, as in gcn3d.Conv_layer

    def support_sum(acc):
        out = acc[:, 0:C]
        for s in range(1, S):
            out = out + acc[:, s * C:(s + 1) * C]
        return out

    def bn_relu(x, gamma_ref, beta_ref):
        mean = jnp.sum(x, axis=0, keepdims=True) * (1.0 / M)
        xc = x - mean
        var = jnp.sum(xc * xc, axis=0, keepdims=True) * (1.0 / M)
        y = xc * jax.lax.rsqrt(var + 1e-5) * gamma_ref[...] + beta_ref[...]
        return jnp.maximum(y, 0.0)

    def dir_unit(nbr_pos):
        d = nbr_pos - verts
        nrm = jnp.sqrt(jnp.sum(d * d, axis=1, keepdims=True))
        return d / jnp.maximum(nrm, 1e-12)          # F.normalize(dim=-1)

    # ----- layer 1: conv_l (first k_l neighbours) + conv_g0 (all k_g) share one k-loop -----
    feat_bf = feat_ref[...].astype(jnp.bfloat16)
    fc_l, fs_l = lin(feat_bf, wc_l_ref, ws_l_ref, bc_l_ref, bs_l_ref)
    fc_g0, fs_g0 = lin(feat_bf, wc_g0_ref, ws_g0_ref, bc_g0_ref, bs_g0_ref)
    gsrc0 = jnp.concatenate([fs_l, fs_g0, verts], axis=1).astype(jnp.bfloat16)   # (M, 2SC+3)

    acc_l = jnp.full((M, SC), -jnp.inf, jnp.float32)
    acc_g = jnp.full((M, SC), -jnp.inf, jnp.float32)
    for k in range(k_g):                            # static unroll, k_g is small (8)
        # TODO(synk): for large N switch the one-hot MXU gather to an index-driven gather
        # (indices via SMEM / scalar prefetch) — O(K*N*C) instead of O(K*N^2*C).
        onehot = (nbr[:, k:k + 1] == col).astype(jnp.bfloat16)                   # (M, M) exact 0/1
        g = jnp.dot(onehot, gsrc0, preferred_element_type=jnp.float32)           # one gather for all
        dhat = dir_unit(g[:, 2 * SC:2 * SC + 3])
        acc_g = jnp.maximum(acc_g, theta(dhat, dir_g0_ref) * g[:, SC:2 * SC])
        if k < k_l:                                 # static: local branch only on first k_l
            acc_l = jnp.maximum(acc_l, theta(dhat, dir_l_ref) * g[:, 0:SC])

    fm_l = bn_relu(fc_l + support_sum(acc_l), gam_l_ref, bet_l_ref)
    fm_g = bn_relu(fc_g0 + support_sum(acc_g), gam_g0_ref, bet_g0_ref)

    # ----- layer 2: conv_g1 on fm_g with the same global neighbours -----
    fg_bf = fm_g.astype(jnp.bfloat16)
    fc_g1, fs_g1 = lin(fg_bf, wc_g1_ref, ws_g1_ref, bc_g1_ref, bs_g1_ref)
    gsrc1 = jnp.concatenate([fs_g1, verts], axis=1).astype(jnp.bfloat16)         # (M, SC+3)

    acc_g1 = jnp.full((M, SC), -jnp.inf, jnp.float32)
    for k in range(k_g):
        onehot = (nbr[:, k:k + 1] == col).astype(jnp.bfloat16)
        g = jnp.dot(onehot, gsrc1, preferred_element_type=jnp.float32)
        dhat = dir_unit(g[:, SC:SC + 3])
        acc_g1 = jnp.maximum(acc_g1, theta(dhat, dir_g1_ref) * g[:, 0:SC])

    fm_g1 = bn_relu(fc_g1 + support_sum(acc_g1), gam_g1_ref, bet_g1_ref)

    # Single lane-dense 2C-wide store; no trailing concatenate outside the kernel.
    out_ref[...] = jnp.concatenate([fm_l, fm_g1], axis=1).astype(out_ref.dtype)


# ---------------------------------------------------------------------------
# Wrappers around pallas_call
# ---------------------------------------------------------------------------

def pairwise_sqdist(vertices):
    bs, N, _ = vertices.shape
    return pl.pallas_call(
        _pdist_kernel,
        out_shape=jax.ShapeDtypeStruct((bs, N, N), jnp.float32),
        grid=(bs,),
        in_specs=[pl.BlockSpec((None, N, 3), lambda b: (b, 0, 0))],
        out_specs=pl.BlockSpec((None, N, N), lambda b: (b, 0, 0)),
        compiler_params=pltpu.CompilerParams(dimension_semantics=("parallel",)),
    )(vertices)


def get_neighbor_index(vertices, neighbor_num):
    """gcn3d.get_neighbor_index: k-NN indices (excluding self), (bs, N, k) int32."""
    dist = pairwise_sqdist(vertices)
    # TODO(synk): top-k selection has no clean Pallas TPU primitive; done in plain JAX.
    _, idx = jax.lax.top_k(-dist, neighbor_num + 1)
    return idx[:, :, 1:]


def gcn_fusion_forward(params, vertices, feat, dim_input, neighbor_num_l, neighbor_num_g):
    assert neighbor_num_l <= neighbor_num_g
    bs, N, _ = vertices.shape
    C = dim_input
    M = bs * N

    # One kNN only: top_k results are distance-sorted, so the k_l local neighbours are a
    # prefix of the k_g global neighbours used inside the fused kernel.
    nbr_g = get_neighbor_index(vertices, neighbor_num_g)                     # (bs, N, Kg)

    # Fold the batch dim into the row dim; offset indices into the flat row space so the
    # one-hot gather never crosses batch boundaries.
    offs = (jnp.arange(bs, dtype=jnp.int32) * N)[:, None, None]
    nbr_flat = (nbr_g.astype(jnp.int32) + offs).reshape(M, neighbor_num_g)
    verts_flat = vertices.reshape(M, 3)
    feat_flat = feat.reshape(M, C)

    def prep_conv(p):
        SC = p["d"].shape[1]
        wc = p["w"][:, :C].astype(jnp.bfloat16)
        ws = p["w"][:, C:].astype(jnp.bfloat16)
        bc = p["b"][:C].reshape(1, C)
        bsup = p["b"][C:].reshape(1, SC)
        dnorm = jnp.sqrt(jnp.sum(p["d"] * p["d"], axis=0, keepdims=True))
        dirn = p["d"] / jnp.maximum(dnorm, 1e-12)                            # F.normalize(dim=0)
        return [wc, ws, bc, bsup, dirn]

    args = [nbr_flat, verts_flat, feat_flat]
    for name in ("conv_l", "conv_g0", "conv_g1"):
        args.extend(prep_conv(params[name]))
    for name in ("bn_l", "bn_g0", "bn_g1"):
        args.append(params[name]["gamma"].reshape(1, C))
        args.append(params[name]["beta"].reshape(1, C))

    # Single fused invocation (everything fits VMEM at these sizes).
    # TODO(synk): on v7x (2 TensorCores) a grid=() launch uses one core; a 2-way row split
    # would need a cross-step BN-stats pass and is not worth it at B*N=128.
    out = pl.pallas_call(
        functools.partial(_gcn_fusion_kernel, k_l=neighbor_num_l),
        out_shape=jax.ShapeDtypeStruct((M, 2 * C), jnp.float32),
        in_specs=[pl.BlockSpec(memory_space=pltpu.MemorySpace.VMEM)] * len(args),
        out_specs=pl.BlockSpec(memory_space=pltpu.MemorySpace.VMEM),
    )(*args)
    return out.reshape(bs, N, 2 * C)


# ---------------------------------------------------------------------------
# GCN_Fusion module (parameters + forward)
# ---------------------------------------------------------------------------

def init_conv_params(key, in_c, out_c, support_num):
    stdv = 1.0 / math.sqrt(out_c * (support_num + 1))
    k1, k2, k3 = jax.random.split(key, 3)
    w = jax.random.uniform(k1, (in_c, (support_num + 1) * out_c), jnp.float32, -stdv, stdv)
    b = jax.random.uniform(k2, ((support_num + 1) * out_c,), jnp.float32, -stdv, stdv)
    d = jax.random.uniform(k3, (3, support_num * out_c), jnp.float32, -stdv, stdv)
    return {"w": w, "b": b, "d": d}


def init_gcn_fusion_params(key, dim_input, support_num):
    k1, k2, k3 = jax.random.split(key, 3)
    bn = lambda: {"gamma": jnp.ones((dim_input,), jnp.float32),
                  "beta": jnp.zeros((dim_input,), jnp.float32)}
    return {
        "conv_l": init_conv_params(k1, dim_input, dim_input, support_num),
        "conv_g0": init_conv_params(k2, dim_input, dim_input, support_num),
        "conv_g1": init_conv_params(k3, dim_input, dim_input, support_num),
        "bn_l": bn(), "bn_g0": bn(), "bn_g1": bn(),
    }


# ---------------------------------------------------------------------------
# Main
# ---------------------------------------------------------------------------

if __name__ == "__main__":
    BS, N, DIM = 2, 64, 32
    SUPPORT_NUM = 1
    NEIGHBOR_L, NEIGHBOR_G = 4, 8

    key = jax.random.PRNGKey(0)
    kv, kf, kp = jax.random.split(key, 3)
    vertices = jax.random.normal(kv, (BS, N, 3), jnp.float32)
    feat = jax.random.normal(kf, (BS, N, DIM), jnp.float32)

    params = init_gcn_fusion_params(kp, DIM, SUPPORT_NUM)

    out = gcn_fusion_forward(params, vertices, feat, DIM, NEIGHBOR_L, NEIGHBOR_G)
    out = jax.block_until_ready(out)

    assert out.shape == (BS, N, 2 * DIM), out.shape
    assert jnp.all(jnp.isfinite(out))
    print("KERNEL_OK")
</pallas_src>

<mosaic_0001>
module attributes {stable_mosaic.version = 11 : i64} {
  func.func @_pdist_kernel(%arg0: i32, %arg1: memref<1x64x3xf32, #tpu.memory_space<vmem>>, %arg2: memref<1x64x64xf32, #tpu.memory_space<vmem>>) attributes {dimension_semantics = [#tpu.dimension_semantics<parallel>], iteration_bounds = array<i64: 2>, scalar_prefetch = 0 : i64, scratch_operands = 0 : i64, tpu.core_type = #tpu.core_type<tc>, window_params = [{transform_indices = @transform_0, window_bounds = array<i64: 1, 64, 3>}, {transform_indices = @transform_1, window_bounds = array<i64: 1, 64, 64>}]} {
    %c0 = arith.constant 0 : index
    %c0_0 = arith.constant 0 : index
    %c0_1 = arith.constant 0 : index
    %0 = vector.load %arg1[%c0, %c0_0, %c0_1] : memref<1x64x3xf32, #tpu.memory_space<vmem>>, vector<1x64x3xf32>
    %1 = vector.shape_cast %0 : vector<1x64x3xf32> to vector<64x3xf32>
    %cst = arith.constant dense<0.000000e+00> : vector<64x64xf32>
    %2 = tpu.matmul %1, %1, %cst {dimension_numbers = #tpu.dot_dimension_numbers<[1], [1], [0], [0], [0, 0, 1, 0], [], []>} : vector<64x3xf32>, vector<64x3xf32>, vector<64x64xf32> -> vector<64x64xf32>
    %3 = arith.mulf %1, %1 : vector<64x3xf32>
    %cst_2 = arith.constant dense<0.000000e+00> : vector<64xf32>
    %4 = vector.multi_reduction <add>, %3, %cst_2 [1] : vector<64x3xf32> to vector<64xf32>
    %5 = vector.shape_cast %4 : vector<64xf32> to vector<64x1xf32>
    %cst_3 = arith.constant 1.000000e+00 : f32
    %6 = vector.broadcast %cst_3 : f32 to vector<64x1xf32>
    %cst_4 = arith.constant dense<0.000000e+00> : vector<64x64xf32>
    %7 = tpu.matmul %6, %5, %cst_4 {dimension_numbers = #tpu.dot_dimension_numbers<[1], [1], [0], [0], [0, 0, 1, 0], [], []>} : vector<64x1xf32>, vector<64x1xf32>, vector<64x64xf32> -> vector<64x64xf32>
    %cst_5 = arith.constant 2.000000e+00 : f32
    %8 = vector.broadcast %cst_5 : f32 to vector<64x64xf32>
    %9 = arith.mulf %8, %2 : vector<64x64xf32>
    %10 = arith.subf %7, %9 : vector<64x64xf32>
    %c0_6 = arith.constant 0 : index
    %c0_7 = arith.constant 0 : index
    %c0_8 = arith.constant 0 : index
    %11 = vector.load %arg2[%c0_6, %c0_7, %c0_8] : memref<1x64x64xf32, #tpu.memory_space<vmem>>, vector<1x64x64xf32>
    %12 = vector.shape_cast %11 : vector<1x64x64xf32> to vector<64x64xf32>
    %13 = vector.shape_cast %10 : vector<64x64xf32> to vector<1x64x64xf32>
    tpu.vector_store %arg2[%c0_6, %c0_7, %c0_8], %13 {strides = array<i32>} : memref<1x64x64xf32, #tpu.memory_space<vmem>>, vector<1x64x64xf32>,
    return
  }
  func.func @transform_0(%arg0: i32) -> (i32, i32, i32) {
    %c0_i32 = arith.constant 0 : i32
    %c0_i32_0 = arith.constant 0 : i32
    %c0_i32_1 = arith.constant 0 : i32
    return %arg0, %c0_i32, %c0_i32_0 : i32, i32, i32
  }
  func.func @transform_1(%arg0: i32) -> (i32, i32, i32) {
    %c0_i32 = arith.constant 0 : i32
    %c0_i32_0 = arith.constant 0 : i32
    %c0_i32_1 = arith.constant 0 : i32
    return %arg0, %c0_i32, %c0_i32_0 : i32, i32, i32
  }
}

</mosaic_0001>

<llo_original>
// kernel: tpu_custom_call.1
$region0: #{tpu_custom_call.1}
  #allocation0 [shape = 'u32[]', space=smem, size = 0x4, offset = 0x4, fixed_abs, tag = 'smem constant byte address 0x4 - core index']
  #allocation1 [shape = 'u32[144,128]{1,0:T(1,128)}', space=vmem, size = 0x12000, scoped, tag = 'internal scratch']
  %s0 = inlined_call_operand.vmem [shape: f32[2,64,3], index: 0, kind: input, shape index: {}]
  %s1 = inlined_call_operand.hbm [shape: f32[2,64,64], index: 1, kind: output, shape index: {}]
  %s2 = sld [smem:[#allocation0]]
  $region37: #{tpu_custom_call.1} parent=0
    _
  %s4 = ssub.s32 1, %s2
  %s5 = scalar_select 0, %s4, %s2
  $region1: #{tpu_custom_call.1} parent=0
    #allocation2 [shape = 'u8[65536]{0}', space=vmem, size = 0x10000, scoped, tag = 'output window, operand 0']
    #allocation3 [shape = 's32[2]{0}', space=sflag, size = 0x8, scoped, tag = 'scoped memory for tpu_custom_call.1']
    %6 = vsyncpa [#allocation3], 0
    %s7 = scalar_lea.sflag [#allocation3], 1
    %8 = vsyncpa %s7, 0
    loop: start=0, step=1, limit=4
    $region2: #{tpu_custom_call.1} parent=1 // loop_pre_header
      _
    $region3: #{tpu_custom_call.1} parent=1 // loop_header
      %s10 = sphi 0, %s14
      %p11 = scmp.ge.s32.totalorder %s10, 4
      %s20 = sphi 0, %s22
      %s23 = sphi 0, %s20
      %s24 = sphi 0, %s23
      %s40 = sphi 0, %s24
      %s46 = sphi 0, %s48
      %s49 = sphi 0, %s46
      %s50 = sphi 0, %s49
      %s66 = sphi 0, %s50
    $region4: #{tpu_custom_call.1} parent=1 // loop_header_branch
      %13 = sbr.rel (%p11) target = $region8
    $region5: #{tpu_custom_call.1} parent=1 // loop_body
      %s15 = ssub.s32 %s10, 1
      %s16 = ssub.s32 %s10, 2
      %s17 = sadd.s32 %s10, 1
      %s18 = ssub.s32 %s10, %s17
      %p19 = scmp.eq.s32.totalorder %s18, 0
      %s21 = sadd.s32 %s20, 1
      %s22 = scalar_select %p19, %s20, %s21
      %p25 = pneg %p19
      %p26 = scmp.eq.s32.totalorder %s10, 1
      %p27 = por %p25, %p26
      %p28 = scmp.ne.s32.totalorder %s20, %s23
      %p29 = scmp.eq.s32.totalorder %s10, 0
      %p30 = por %p28, %p29
      %p31 = scmp.ne.s32.totalorder %s20, %s23
      %p32 = scmp.eq.s32.totalorder %s15, 1
      %p33 = por %p31, %p32
      %p34 = scmp.ne.s32.totalorder %s23, %s24
      %p35 = scmp.eq.s32.totalorder %s15, 0
      %p36 = por %p34, %p35
      %p37 = scmp.ne.s32.totalorder %s23, %s24
      %p38 = scmp.eq.s32.totalorder %s16, 1
      %p39 = por %p37, %p38
      %p41 = scmp.ne.s32.totalorder %s24, %s40
      %p42 = scmp.eq.s32.totalorder %s16, 0
      %p43 = por %p41, %p42
      %s44 = ssub.s32 %s10, %s17
      %p45 = scmp.eq.s32.totalorder %s44, 0
      %s47 = sadd.s32 %s46, 1
      %s48 = scalar_select %p45, %s46, %s47
      %p51 = pneg %p45
      %p52 = scmp.eq.s32.totalorder %s10, 1
      %p53 = por %p51, %p52
      %p54 = scmp.ne.s32.totalorder %s46, %s49
      %p55 = scmp.eq.s32.totalorder %s10, 0
      %p56 = por %p54, %p55
      %p57 = scmp.ne.s32.totalorder %s46, %s49
      %p58 = scmp.eq.s32.totalorder %s15, 1
      %p59 = por %p57, %p58
      %p60 = scmp.ne.s32.totalorder %s49, %s50
      %p61 = scmp.eq.s32.totalorder %s15, 0
      %p62 = por %p60, %p61
      %p63 = scmp.ne.s32.totalorder %s49, %s50
      %p64 = scmp.eq.s32.totalorder %s16, 1
      %p65 = por %p63, %p64
      %p67 = scmp.ne.s32.totalorder %s50, %s66
      %p68 = scmp.eq.s32.totalorder %s16, 0
      %p69 = por %p67, %p68
      %p70 = scmp.le.s32.totalorder 1, %s10
      %p71 = scmp.lt.s32.totalorder %s10, 3
      %p72 = pnand %p70, %p71
      %p73 = pneg %p72
      // Predicated region
      $region9: #{tpu_custom_call.1} parent=5 // pred_check
        _
      $region10: #{tpu_custom_call.1} parent=5 // pred_check_branch
        %75 = sbr.rel (%p72) target = $region12
      $region11: #{tpu_custom_call.1} parent=5 // pred_region
        %s76 = ssub.s32 %s10, 1
      $region12: #{tpu_custom_call.1} parent=5 // pred_fallthru
        _
      %p77 = scmp.lt.s32.totalorder %s10, 2
      // Predicated region
      $region13: #{tpu_custom_call.1} parent=5 // pred_check
        %p78 = pneg %p77
      $region14: #{tpu_custom_call.1} parent=5 // pred_check_branch
        %80 = sbr.rel (%p78) target = $region16
      $region15: #{tpu_custom_call.1} parent=5 // pred_region
        // Predicated region
        $region17: #{tpu_custom_call.1} parent=15 // pred_check
          %p81 = pneg %p30
        $region18: #{tpu_custom_call.1} parent=15 // pred_check_branch
          %83 = sbr.rel (%p81) target = $region20
        $region19: #{tpu_custom_call.1} parent=15 // pred_region
          %p84 = scmp.lt.s32.totalorder %s10, 1
          %s85 = scalar_select %p84, %s10, 1
          %s86 = smul.addr %s85, 8
          %s87 = smul.addr %s86, 8
          %s88 = scalar_lea.vmem %s0, %s87
        $region20: #{tpu_custom_call.1} parent=15 // pred_fallthru
          _
      $region16: #{tpu_custom_call.1} parent=5 // pred_fallthru
        _
      %p89 = scmp.le.s32.totalorder 1, %s10
      %p90 = scmp.lt.s32.totalorder %s10, 3
      %p91 = pnand %p89, %p90
      %p92 = pneg %p91
      // Predicated region
      $region21: #{tpu_custom_call.1} parent=5 // pred_check
        _
      $region22: #{tpu_custom_call.1} parent=5 // pred_check_branch
        %94 = sbr.rel (%p91) target = $region24
      $region23: #{tpu_custom_call.1} parent=5 // pred_region
        %s95 = ssub.s32 %s10, 1
        %p96 = scmp.lt.s32.totalorder %s15, 1
        %s97 = scalar_select %p96, %s15, 1
        %s98 = smul.addr %s97, 8
        %s99 = smul.addr %s98, 8
        %s100 = scalar_lea.vmem %s0, %s99
        %p101 = pneg %p36
        %p102 = pneg %p33
        %p103 = pneg %p62
        %p104 = pneg %p59
        %s105 = sand.u32 %s49, 1
        %s106 = scalar_lea.sflag [#allocation3], %s105
        %s107 = sand.u32 %s49, 1
        %s108 = smul.addr %s107, 64
        %s109 = scalar_lea.vmem [#allocation2], %s108
        %p110 = scmp.lt.s32.totalorder %s15, 1
        %s111 = scalar_select %p110, %s15, 1
        %s112 = smul.addr %s111, 8
        %s113 = smul.addr %s112, 8
        %s114 = scalar_lea.vmem %s0, %s113
        %v115 = vld [vmem:[%s114] sm:$0xff]
        %v116 = vld [vmem:[%s114 + $0x8] sm:$0xff]
        %v117 = vld [vmem:[%s114 + $0x10] sm:$0xff]
        %v118 = vld [vmem:[%s114 + $0x18] sm:$0xff]
        %v119 = vld [vmem:[%s114 + $0x20] sm:$0xff]
        %v120 = vld [vmem:[%s114 + $0x28] sm:$0xff]
        %v121 = vld [vmem:[%s114 + $0x30] sm:$0xff]
        %v122 = vld [vmem:[%s114 + $0x38] sm:$0xff]
        %vm123 = vcmask 23552
        %v125 = vsel %vm123, %v115, 0
        %v128 = vsel %vm123, %v116, 0
        %v131 = vsel %vm123, %v117, 0
        %v134 = vsel %vm123, %v118, 0
        %v137 = vsel %vm123, %v119, 0
        %v140 = vsel %vm123, %v120, 0
        %v143 = vsel %vm123, %v121, 0
        %v146 = vsel %vm123, %v122, 0
        %148 = vmatprep.subr.mxu0 0.0
        %149 = vmatpush1.xpose.msra.mxu0 %v125
        %150 = vmatprep.subr.mxu0 0.0
        %151 = vmatpush1.xpose.msra.mxu0 %v128
        %152 = vmatprep.subr.mxu0 0.0
        %153 = vmatpush1.xpose.msra.mxu0 %v131
        %154 = vmatprep.subr.mxu0 0.0
        %155 = vmatpush1.xpose.msra.mxu0 %v134
        %156 = vmatprep.subr.mxu0 0.0
        %157 = vmatpush1.xpose.msra.mxu0 %v137
        %158 = vmatprep.subr.mxu0 0.0
        %159 = vmatpush1.xpose.msra.mxu0 %v140
        %160 = vmatprep.subr.mxu0 0.0
        %161 = vmatpush1.xpose.msra.mxu0 %v143
        %162 = vmatprep.subr.mxu0 0.0
        %163 = vmatpush1.xpose.msra.mxu0 %v146
        %164 = vmatprep.subr.mxu0 0.0
        %165 = vmatpush1.xpose.msra.mxu0 0.0
        %166 = vmatprep.subr.mxu0 0.0
        %167 = vmatpush1.xpose.msra.mxu0 0.0
        %168 = vmatprep.subr.mxu0 0.0
        %169 = vmatpush1.xpose.msra.mxu0 0.0
        %170 = vmatprep.subr.mxu0 0.0
        %171 = vmatpush1.xpose.msra.mxu0 0.0
        %172 = vmatprep.subr.mxu0 0.0
        %173 = vmatpush1.xpose.msra.mxu0 0.0
        %174 = vmatprep.subr.mxu0 0.0
        %175 = vmatpush1.xpose.msra.mxu0 0.0
        %176 = vmatprep.subr.mxu0 0.0
        %177 = vmatpush1.xpose.msra.mxu0 0.0
        %178 = vmatprep.subr.mxu0 0.0
        %179 = vmatpush1.xpose.msra.mxu0 0.0
        %180 = vmatprep.subr.mxu0 0.0
        %181 = vmatpush1.xpose.msra.mxu0 0.0
        %182 = vmatprep.subr.mxu0 0.0
        %183 = vmatpush1.xpose.msra.mxu0 0.0
        %184 = vmatprep.subr.mxu0 0.0
        %185 = vmatpush1.xpose.msra.mxu0 0.0
        %186 = vmatprep.subr.mxu0 0.0
        %187 = vmatpush1.xpose.msra.mxu0 0.0
        %188 = vmatprep.subr.mxu0 0.0
        %189 = vmatpush1.xpose.msra.mxu0 0.0
        %190 = vmatprep.subr.mxu0 0.0
        %191 = vmatpush1.xpose.msra.mxu0 0.0
        %192 = vmatprep.subr.mxu0 0.0
        %193 = vmatpush1.xpose.msra.mxu0 0.0
        %194 = vmatprep.subr.mxu0 0.0
        %195 = vmatpush1.xpose.msra.mxu0 0.0
        %196 = vmatprep.subr.mxu0 0.0
        %197 = vmatpush1.xpose.msra.mxu0 0.0
        %198 = vmatprep.subr.mxu0 0.0
        %199 = vmatpush1.xpose.msra.mxu0 0.0
        %200 = vmatprep.subr.mxu0 0.0
        %201 = vmatpush1.xpose.msra.mxu0 0.0
        %202 = vmatprep.subr.mxu0 0.0
        %203 = vmatpush1.xpose.msra.mxu0 0.0
        %204 = vmatprep.subr.mxu0 0.0
        %205 = vmatpush1.xpose.msra.mxu0 0.0
        %206 = vmatprep.subr.mxu0 0.0
        %207 = vmatpush1.xpose.msra.mxu0 0.0
        %208 = vmatprep.subr.mxu0 0.0
        %209 = vmatpush1.xpose.msra.mxu0 0.0
        %210 = vmatprep.subr.mxu0 0.0
        %211 = vmatpush1.xpose.msra.mxu0 0.0
        %212 = vmatprep.mubr.f32.mxu0 0.0
        %213 = vmatmul.mubr.f32.gmra.mrb[0].mxu0 %v125
        %v214 = vpop.f32.mrb[0].mxu0
        %v215 = vadd.f32 0.0, %v214
        %v216 = vpop.f32.mrb[0].mxu0
        %217 = vmatprep.mubr.f32.mxu0 0.0
        %218 = vmatmul.mubr.f32.gmra.mrb[0].mxu0 %v128
        %v219 = vpop.f32.mrb[0].mxu0
        %v220 = vadd.f32 0.0, %v219
        %v221 = vpop.f32.mrb[0].mxu0
        %222 = vmatprep.mubr.f32.mxu0 0.0
        %223 = vmatmul.mubr.f32.gmra.mrb[0].mxu0 %v131
        %v224 = vpop.f32.mrb[0].mxu0
        %v225 = vadd.f32 0.0, %v224
        %v226 = vpop.f32.mrb[0].mxu0
        %227 = vmatprep.mubr.f32.mxu0 0.0
        %228 = vmatmul.mubr.f32.gmra.mrb[0].mxu0 %v134
        %v229 = vpop.f32.mrb[0].mxu0
        %v230 = vadd.f32 0.0, %v229
        %v231 = vpop.f32.mrb[0].mxu0
        %232 = vmatprep.mubr.f32.mxu0 0.0
        %233 = vmatmul.mubr.f32.gmra.mrb[0].mxu0 %v137
        %v234 = vpop.f32.mrb[0].mxu0
        %v235 = vadd.f32 0.0, %v234
        %v236 = vpop.f32.mrb[0].mxu0
        %237 = vmatprep.mubr.f32.mxu0 0.0
        %238 = vmatmul.mubr.f32.gmra.mrb[0].mxu0 %v140
        %v239 = vpop.f32.mrb[0].mxu0
        %v240 = vadd.f32 0.0, %v239
        %v241 = vpop.f32.mrb[0].mxu0
        %242 = vmatprep.mubr.f32.mxu0 0.0
        %243 = vmatmul.mubr.f32.gmra.mrb[0].mxu0 %v143
        %v244 = vpop.f32.mrb[0].mxu0
        %v245 = vadd.f32 0.0, %v244
        %v246 = vpop.f32.mrb[0].mxu0
        %247 = vmatprep.mubr.f32.mxu0 0.0
        %248 = vmatmul.mubr.f32.gmra.mrb[0].mxu0 %v146
        %v249 = vpop.f32.mrb[0].mxu0
        %v250 = vadd.f32 0.0, %v249
        %v251 = vpop.f32.mrb[0].mxu0
        %252 = vdwg.mxu0
        %v253 = vmul.f32 %v115, %v115
        %v254 = vmul.f32 %v116, %v116
        %v255 = vmul.f32 %v117, %v117
        %v256 = vmul.f32 %v118, %v118
        %v257 = vmul.f32 %v119, %v119
        %v258 = vmul.f32 %v120, %v120
        %v259 = vmul.f32 %v121, %v121
        %v260 = vmul.f32 %v122, %v122
        %v261 = vsel %vm123, %v253, 0.0
        %262 = vadd.xlane.f32.xlu0 %v261
        %v263 = vpop.xlane.xlu0 %262
        %v264 = vsel %vm123, %v254, 0.0
        %265 = vadd.xlane.f32.xlu0 %v264
        %v266 = vpop.xlane.xlu0 %265
        %v267 = vsel %vm123, %v255, 0.0
        %268 = vadd.xlane.f32.xlu0 %v267
        %v269 = vpop.xlane.xlu0 %268
        %v270 = vsel %vm123, %v256, 0.0
        %271 = vadd.xlane.f32.xlu0 %v270
        %v272 = vpop.xlane.xlu0 %271
        %v273 = vsel %vm123, %v257, 0.0
        %274 = vadd.xlane.f32.xlu0 %v273
        %v275 = vpop.xlane.xlu0 %274
        %v276 = vsel %vm123, %v258, 0.0
        %277 = vadd.xlane.f32.xlu0 %v276
        %v278 = vpop.xlane.xlu0 %277
        %v279 = vsel %vm123, %v259, 0.0
        %280 = vadd.xlane.f32.xlu0 %v279
        %v281 = vpop.xlane.xlu0 %280
        %v282 = vsel %vm123, %v260, 0.0
        %283 = vadd.xlane.f32.xlu0 %v282
        %v284 = vpop.xlane.xlu0 %283
        %vm285 = vcmask 7168
        %v287 = vsel %vm285, 1.0, 0
        %v290 = vsel %vm285, %v263, 0
        %v293 = vsel %vm285, %v266, 0
        %v296 = vsel %vm285, %v269, 0
        %v299 = vsel %vm285, %v272, 0
        %v302 = vsel %vm285, %v275, 0
        %v305 = vsel %vm285, %v278, 0
        %v308 = vsel %vm285, %v281, 0
        %v311 = vsel %vm285, %v284, 0
        %313 = vmatprep.subr.mxu0 0.0
        %314 = vmatpush1.xpose.msra.mxu0 %v290
        %315 = vmatprep.subr.mxu0 0.0
        %316 = vmatpush1.xpose.msra.mxu0 %v293
        %317 = vmatprep.subr.mxu0 0.0
        %318 = vmatpush1.xpose.msra.mxu0 %v296
        %319 = vmatprep.subr.mxu0 0.0
        %320 = vmatpush1.xpose.msra.mxu0 %v299
        %321 = vmatprep.subr.mxu0 0.0
        %322 = vmatpush1.xpose.msra.mxu0 %v302
        %323 = vmatprep.subr.mxu0 0.0
        %324 = vmatpush1.xpose.msra.mxu0 %v305
        %325 = vmatprep.subr.mxu0 0.0
        %326 = vmatpush1.xpose.msra.mxu0 %v308
        %327 = vmatprep.subr.mxu0 0.0
        %328 = vmatpush1.xpose.msra.mxu0 %v311
        %329 = vmatprep.subr.mxu0 0.0
        %330 = vmatpush1.xpose.msra.mxu0 0.0
        %331 = vmatprep.subr.mxu0 0.0
        %332 = vmatpush1.xpose.msra.mxu0 0.0
        %333 = vmatprep.subr.mxu0 0.0
        %334 = vmatpush1.xpose.msra.mxu0 0.0
        %335 = vmatprep.subr.mxu0 0.0
        %336 = vmatpush1.xpose.msra.mxu0 0.0
        %337 = vmatprep.subr.mxu0 0.0
        %338 = vmatpush1.xpose.msra.mxu0 0.0
        %339 = vmatprep.subr.mxu0 0.0
        %340 = vmatpush1.xpose.msra.mxu0 0.0
        %341 = vmatprep.subr.mxu0 0.0
        %342 = vmatpush1.xpose.msra.mxu0 0.0
        %343 = vmatprep.subr.mxu0 0.0
        %344 = vmatpush1.xpose.msra.mxu0 0.0
        %345 = vmatprep.subr.mxu0 0.0
        %346 = vmatpush1.xpose.msra.mxu0 0.0
        %347 = vmatprep.subr.mxu0 0.0
        %348 = vmatpush1.xpose.msra.mxu0 0.0
        %349 = vmatprep.subr.mxu0 0.0
        %350 = vmatpush1.xpose.msra.mxu0 0.0
        %351 = vmatprep.subr.mxu0 0.0
        %352 = vmatpush1.xpose.msra.mxu0 0.0
        %353 = vmatprep.subr.mxu0 0.0
        %354 = vmatpush1.xpose.msra.mxu0 0.0
        %355 = vmatprep.subr.mxu0 0.0
        %356 = vmatpush1.xpose.msra.mxu0 0.0
        %357 = vmatprep.subr.mxu0 0.0
        %358 = vmatpush1.xpose.msra.mxu0 0.0
        %359 = vmatprep.subr.mxu0 0.0
        %360 = vmatpush1.xpose.msra.mxu0 0.0
        %361 = vmatprep.subr.mxu0 0.0
        %362 = vmatpush1.xpose.msra.mxu0 0.0
        %363 = vmatprep.subr.mxu0 0.0
        %364 = vmatpush1.xpose.msra.mxu0 0.0
        %365 = vmatprep.subr.mxu0 0.0
        %366 = vmatpush1.xpose.msra.mxu0 0.0
        %367 = vmatprep.subr.mxu0 0.0
        %368 = vmatpush1.xpose.msra.mxu0 0.0
        %369 = vmatprep.subr.mxu0 0.0
        %370 = vmatpush1.xpose.msra.mxu0 0.0
        %371 = vmatprep.subr.mxu0 0.0
        %372 = vmatpush1.xpose.msra.mxu0 0.0
        %373 = vmatprep.subr.mxu0 0.0
        %374 = vmatpush1.xpose.msra.mxu0 0.0
        %375 = vmatprep.subr.mxu0 0.0
        %376 = vmatpush1.xpose.msra.mxu0 0.0
        %377 = vmatprep.mubr.f32.mxu0 0.0
        %378 = vmatmul.mubr.f32.gmra.mrb[0].mxu0 %v287
        %v379 = vpop.f32.mrb[0].mxu0
        %v380 = vadd.f32 0.0, %v379
        %v381 = vpop.f32.mrb[0].mxu0
        %382 = vmatprep.mubr.f32.mxu0 0.0
        %383 = vmatmul.mubr.f32.gmra.mrb[0].mxu0 %v287
        %v384 = vpop.f32.mrb[0].mxu0
        %v385 = vadd.f32 0.0, %v384
        %v386 = vpop.f32.mrb[0].mxu0
        %387 = vmatprep.mubr.f32.mxu0 0.0
        %388 = vmatmul.mubr.f32.gmra.mrb[0].mxu0 %v287
        %v389 = vpop.f32.mrb[0].mxu0
        %v390 = vadd.f32 0.0, %v389
        %v391 = vpop.f32.mrb[0].mxu0
        %392 = vmatprep.mubr.f32.mxu0 0.0
        %393 = vmatmul.mubr.f32.gmra.mrb[0].mxu0 %v287
        %v394 = vpop.f32.mrb[0].mxu0
        %v395 = vadd.f32 0.0, %v394
        %v396 = vpop.f32.mrb[0].mxu0
        %397 = vmatprep.mubr.f32.mxu0 0.0
        %398 = vmatmul.mubr.f32.gmra.mrb[0].mxu0 %v287
        %v399 = vpop.f32.mrb[0].mxu0
        %v400 = vadd.f32 0.0, %v399
        %v401 = vpop.f32.mrb[0].mxu0
        %402 = vmatprep.mubr.f32.mxu0 0.0
        %403 = vmatmul.mubr.f32.gmra.mrb[0].mxu0 %v287
        %v404 = vpop.f32.mrb[0].mxu0
        %v405 = vadd.f32 0.0, %v404
        %v406 = vpop.f32.mrb[0].mxu0
        %407 = vmatprep.mubr.f32.mxu0 0.0
        %408 = vmatmul.mubr.f32.gmra.mrb[0].mxu0 %v287
        %v409 = vpop.f32.mrb[0].mxu0
        %v410 = vadd.f32 0.0, %v409
        %v411 = vpop.f32.mrb[0].mxu0
        %412 = vmatprep.mubr.f32.mxu0 0.0
        %413 = vmatmul.mubr.f32.gmra.mrb[0].mxu0 %v287
        %v414 = vpop.f32.mrb[0].mxu0
        %v415 = vadd.f32 0.0, %v414
        %v416 = vpop.f32.mrb[0].mxu0
        %417 = vdwg.mxu0
        %v418 = vmul.f32 %v215, 2.0
        %v419 = vmul.f32 %v220, 2.0
        %v420 = vmul.f32 %v225, 2.0
        %v421 = vmul.f32 %v230, 2.0
        %v422 = vmul.f32 %v235, 2.0
        %v423 = vmul.f32 %v240, 2.0
        %v424 = vmul.f32 %v245, 2.0
        %v425 = vmul.f32 %v250, 2.0
        %v426 = vsub.f32 %v380, %v418
        %v427 = vsub.f32 %v385, %v419
        %v428 = vsub.f32 %v390, %v420
        %v429 = vsub.f32 %v395, %v421
        %v430 = vsub.f32 %v400, %v422
        %v431 = vsub.f32 %v405, %v423
        %v432 = vsub.f32 %v410, %v424
        %v433 = vsub.f32 %v415, %v425
        %vm434 = vcmask 523264
        %435 = vst.msk [vmem:[%s109] sm:$0xff] %vm434, %v426
        %436 = vst.msk [vmem:[%s109 + $0x8] sm:$0xff] %vm434, %v427
        %437 = vst.msk [vmem:[%s109 + $0x10] sm:$0xff] %vm434, %v428
        %438 = vst.msk [vmem:[%s109 + $0x18] sm:$0xff] %vm434, %v429
        %439 = vst.msk [vmem:[%s109 + $0x20] sm:$0xff] %vm434, %v430
        %440 = vst.msk [vmem:[%s109 + $0x28] sm:$0xff] %vm434, %v431
        %441 = vst.msk [vmem:[%s109 + $0x30] sm:$0xff] %vm434, %v432
        %442 = vst.msk [vmem:[%s109 + $0x38] sm:$0xff] %vm434, %v433
        %s443 = sand.u32 %s49, 1
        %s444 = scalar_lea.sflag [#allocation3], %s443
        %s445 = sand.u32 %s49, 1
        %s446 = smul.addr %s445, 64
        %s447 = scalar_lea.vmem [#allocation2], %s446
        // Predicated region
        $region25: #{tpu_custom_call.1} parent=23 // pred_check
          %p448 = pneg %p59
        $region26: #{tpu_custom_call.1} parent=23 // pred_check_branch
          %450 = sbr.rel (%p448) target = $region28
        $region27: #{tpu_custom_call.1} parent=23 // pred_region
          %s452 = ssub.s32 1024, 1024
          %453 = vsyncadd %s444, %s452
          %s454 = smul.addr %s15, 8
          %s455 = smul.addr %s454, 128
          %s456 = scalar_lea.hbm %s1, %s455
          %s457 = sshll.u32 %s447, 4
          %s458 = int_to_ptr.vmem [resolvable:$true] %s457
          %463 = dma.vmem_to_hbm [thread:$0]  %s458, 1024, %s456, %s444, 128, 128, 8
        $region28: #{tpu_custom_call.1} parent=23 // pred_fallthru
          _
      $region24: #{tpu_custom_call.1} parent=5 // pred_fallthru
        _
      %p464 = scmp.le.s32.totalorder 2, %s10
      // Predicated region
      $region29: #{tpu_custom_call.1} parent=5 // pred_check
        %p465 = pneg %p464
      $region30: #{tpu_custom_call.1} parent=5 // pred_check_branch
        %467 = sbr.rel (%p465) target = $region32
      $region31: #{tpu_custom_call.1} parent=5 // pred_region
        %s468 = ssub.s32 %s10, 2
        // Predicated region
        $region33: #{tpu_custom_call.1} parent=31 // pred_check
          %p469 = pneg %p65
        $region34: #{tpu_custom_call.1} parent=31 // pred_check_branch
          %471 = sbr.rel (%p469) target = $region36
        $region35: #{tpu_custom_call.1} parent=31 // pred_region
          %s472 = sand.u32 %s50, 1
          %s473 = scalar_lea.sflag [#allocation3], %s472
          %s474 = sand.u32 %s50, 1
          %s475 = smul.addr %s474, 64
          %s476 = scalar_lea.vmem [#allocation2], %s475
          %477 = dma.done %s473, 1024
        $region36: #{tpu_custom_call.1} parent=31 // pred_fallthru
          _
      $region32: #{tpu_custom_call.1} parent=5 // pred_fallthru
        _
    $region6: #{tpu_custom_call.1} parent=1 // loop_footer
      %s14 = sadd.s32 1, %s10
    $region7: #{tpu_custom_call.1} parent=1 // loop_footer_branch
      %9 = sbr.rel target = $region3
    $region8: #{tpu_custom_call.1} parent=1 // loop_exit
      _
    %478 = vsyncpa [#allocation3], 1
    %s479 = scalar_lea.sflag [#allocation3], 1
    %480 = vsyncpa %s479, 1

</llo_original>
